<compile_context>
chip_gen: v5e
topology: v5e:2x2
jax: 0.10.0
libtpu: 0.0.40
codegen_flags: <defaults>
</compile_context>

<pallas_src>
import functools
import math

import jax
import jax.numpy as jnp
from jax.experimental import pallas as pl
from jax.experimental.pallas import tpu as pltpu


def mhsa_kernel(xq_ref, xkv_ref, wq_ref, wk_ref, wv_ref,
                bq_ref, bk_ref, bv_ref, wproj_ref, bproj_ref,
                o_ref, acc_ref, *, num_heads, head_dim, compute_dtype):
    """One grid step = one (batch, query-tile, head). Heads accumulate into acc_ref."""
    h = pl.program_id(2)
    scale = 1.0 / math.sqrt(head_dim)

    xq = xq_ref[0]      # (TQ, C)  compute_dtype
    xkv = xkv_ref[0]    # (N,  C)  compute_dtype

    # Per-head projections: full-C contraction -> lane-contiguous (TQ/N, D) tiles.
    # f32 accumulation via preferred_element_type; biases stay f32.
    q = jnp.dot(xq, wq_ref[0], preferred_element_type=jnp.float32) + bq_ref[0]
    q = q * scale                                   # fold 1/sqrt(D) into q (TQ*D muls)
    k = jnp.dot(xkv, wk_ref[0], preferred_element_type=jnp.float32) + bk_ref[0]
    v = jnp.dot(xkv, wv_ref[0], preferred_element_type=jnp.float32) + bv_ref[0]

    # Scores (TQ, N): contract over head_dim without materializing k.T.
    s = jax.lax.dot_general(
        q.astype(compute_dtype), k.astype(compute_dtype),
        dimension_numbers=(((1,), (1,)), ((), ())),
        preferred_element_type=jnp.float32)

    # Numerically-stable softmax; statistics kept in f32.
    s = s - jnp.max(s, axis=-1, keepdims=True)
    p = jnp.exp(s)
    p = p * pl.reciprocal(jnp.sum(p, axis=-1, keepdims=True), approx=True)

    # (TQ, D) head output, then this head's slice of the output projection.
    head_out = jnp.dot(p.astype(compute_dtype), v.astype(compute_dtype),
                       preferred_element_type=jnp.float32)
    contrib = jnp.dot(head_out.astype(compute_dtype), wproj_ref[0],
                      preferred_element_type=jnp.float32)          # (TQ, C)

    @pl.when(h == 0)
    def _():
        acc_ref[...] = jnp.zeros_like(acc_ref)

    acc_ref[...] += contrib

    @pl.when(h == num_heads - 1)
    def _():
        o_ref[0] = (acc_ref[...] + bproj_ref[...]).astype(o_ref.dtype)


def multi_head_self_attention(x, w_qkv, b_qkv, w_proj, b_proj, num_heads,
                              *, block_q=256, compute_dtype=jnp.bfloat16):
    """x: (B, N, C); w_qkv: (C, 3C); b_qkv: (3C,); w_proj: (C, C); b_proj: (C,)."""
    B, N, C = x.shape
    assert C % num_heads == 0
    D = C // num_heads

    TQ = min(block_q, N)
    assert N % TQ == 0 and (TQ % 8 == 0 or TQ == N), "query tile must align to (8,128) rules"
    num_q_tiles = N // TQ

    # --- per-head weight / bias blocks (head becomes a grid axis) -------------------------
    # 3C axis of the qkv projection is laid out as [s (3), h (H), d (D)] (PyTorch reshape).
    w_qkv_h = w_qkv.reshape(C, 3, num_heads, D).transpose(1, 2, 0, 3)    # (3, H, C, D)
    w_q = w_qkv_h[0].astype(compute_dtype)
    w_k = w_qkv_h[1].astype(compute_dtype)
    w_v = w_qkv_h[2].astype(compute_dtype)
    b_qkv_h = b_qkv.reshape(3, num_heads, 1, D).astype(jnp.float32)      # (3, H, 1, D)
    b_q, b_k, b_v = b_qkv_h[0], b_qkv_h[1], b_qkv_h[2]
    w_proj_h = w_proj.reshape(num_heads, D, C).astype(compute_dtype)     # (H, D, C)
    b_proj2 = b_proj.reshape(1, C).astype(jnp.float32)                   # (1, C)
    x_c = x.astype(compute_dtype)

    kernel = functools.partial(mhsa_kernel, num_heads=num_heads, head_dim=D,
                               compute_dtype=compute_dtype)

    # Advisory cost estimate so XLA schedules surrounding ops around this custom call.
    flops = int(2 * B * N * C * (4 * C + 2 * N))
    transcendentals = int(B * num_heads * N * N)
    cbytes = jnp.dtype(compute_dtype).itemsize
    bytes_accessed = int(x.size * cbytes + (w_qkv.size + w_proj.size) * cbytes
                         + (b_qkv.size + b_proj.size) * 4
                         + x.size * jnp.dtype(x.dtype).itemsize)
    cost = pl.CostEstimate(flops=flops, transcendentals=transcendentals,
                           bytes_accessed=bytes_accessed)

    return pl.pallas_call(
        kernel,
        out_shape=jax.ShapeDtypeStruct((B, N, C), x.dtype),
        grid_spec=pltpu.PrefetchScalarGridSpec(
            num_scalar_prefetch=0,
            grid=(B, num_q_tiles, num_heads),
            in_specs=[
                pl.BlockSpec((1, TQ, C), lambda b, qi, h: (b, qi, 0)),   # x (query tile)
                pl.BlockSpec((1, N, C),  lambda b, qi, h: (b, 0, 0)),    # x (for K/V)
                pl.BlockSpec((1, C, D),  lambda b, qi, h: (h, 0, 0)),    # W_q head block
                pl.BlockSpec((1, C, D),  lambda b, qi, h: (h, 0, 0)),    # W_k head block
                pl.BlockSpec((1, C, D),  lambda b, qi, h: (h, 0, 0)),    # W_v head block
                pl.BlockSpec((1, 1, D),  lambda b, qi, h: (h, 0, 0)),    # b_q
                pl.BlockSpec((1, 1, D),  lambda b, qi, h: (h, 0, 0)),    # b_k
                pl.BlockSpec((1, 1, D),  lambda b, qi, h: (h, 0, 0)),    # b_v
                pl.BlockSpec((1, D, C),  lambda b, qi, h: (h, 0, 0)),    # W_proj head rows
                pl.BlockSpec((1, C),     lambda b, qi, h: (0, 0)),       # b_proj
            ],
            out_specs=pl.BlockSpec((1, TQ, C), lambda b, qi, h: (b, qi, 0)),
            scratch_shapes=[pltpu.VMEM((TQ, C), jnp.float32)],           # head-reduction acc
        ),
        compiler_params=pltpu.CompilerParams(
            dimension_semantics=("parallel", "parallel", "arbitrary"),
            vmem_limit_bytes=32 * 1024 * 1024),
        cost_estimate=cost,
    )(x_c, x_c, w_q, w_k, w_v, b_q, b_k, b_v, w_proj_h, b_proj2)


def reference_mhsa(x, w_qkv, b_qkv, w_proj, b_proj, num_heads):
    """Pure-JAX reference mirroring the PyTorch forward pass exactly (f32)."""
    B, N, C = x.shape
    D = C // num_heads
    qkv = x @ w_qkv + b_qkv                                  # (B, N, 3C)
    qkv = qkv.reshape(B, N, 3, num_heads, D)
    qkv = jnp.transpose(qkv, (2, 0, 3, 1, 4))                # (3, B, H, N, D)
    q, k, v = qkv[0], qkv[1], qkv[2]
    attn = (q @ jnp.swapaxes(k, -2, -1)) / math.sqrt(D)
    attn = jax.nn.softmax(attn, axis=-1)
    out = attn @ v                                           # (B, H, N, D)
    out = jnp.transpose(out, (0, 2, 1, 3)).reshape(B, N, C)
    return out @ w_proj + b_proj


if __name__ == "__main__":
    B, N, C = 2, 8, 32
    num_heads = 4

    key = jax.random.PRNGKey(0)
    kx, k1, k2, k3, k4 = jax.random.split(key, 5)

    x = jax.random.normal(kx, (B, N, C), dtype=jnp.float32)

    bound = 1.0 / math.sqrt(C)   # nn.Linear(dim, dim*3) / nn.Linear(dim, dim) init ranges
    w_qkv = jax.random.uniform(k1, (C, 3 * C), jnp.float32, -bound, bound)
    b_qkv = jax.random.uniform(k2, (3 * C,), jnp.float32, -bound, bound)
    w_proj = jax.random.uniform(k3, (C, C), jnp.float32, -bound, bound)
    b_proj = jax.random.uniform(k4, (C,), jnp.float32, -bound, bound)

    ref = reference_mhsa(x, w_qkv, b_qkv, w_proj, b_proj, num_heads)

    # f32-operand path: only deviation from the reference is the approx reciprocal.
    out_f32 = multi_head_self_attention(x, w_qkv, b_qkv, w_proj, b_proj, num_heads,
                                        compute_dtype=jnp.float32)
    out_f32 = jax.block_until_ready(out_f32)
    assert out_f32.shape == (B, N, C)
    assert jnp.allclose(out_f32, ref, atol=5e-3, rtol=5e-3), "f32 path mismatch vs reference"

    # Default fast path: bf16 MXU operands, f32 accumulation / softmax statistics.
    out_bf16 = multi_head_self_attention(x, w_qkv, b_qkv, w_proj, b_proj, num_heads)
    out_bf16 = jax.block_until_ready(out_bf16)
    assert out_bf16.shape == (B, N, C)
    assert jnp.allclose(out_bf16, ref, atol=5e-2, rtol=5e-2), "bf16 path mismatch vs reference"

    print("KERNEL_OK")
</pallas_src>

<mosaic_0001>
module attributes {stable_mosaic.version = 11 : i64} {
  func.func @mhsa_kernel(%arg0: i32, %arg1: i32, %arg2: i32, %arg3: memref<1x8x32xf32, #tpu.memory_space<vmem>>, %arg4: memref<1x8x32xf32, #tpu.memory_space<vmem>>, %arg5: memref<1x32x8xf32, #tpu.memory_space<vmem>>, %arg6: memref<1x32x8xf32, #tpu.memory_space<vmem>>, %arg7: memref<1x32x8xf32, #tpu.memory_space<vmem>>, %arg8: memref<1x1x8xf32, #tpu.memory_space<vmem>>, %arg9: memref<1x1x8xf32, #tpu.memory_space<vmem>>, %arg10: memref<1x1x8xf32, #tpu.memory_space<vmem>>, %arg11: memref<1x8x32xf32, #tpu.memory_space<vmem>>, %arg12: memref<1x32xf32, #tpu.memory_space<vmem>>, %arg13: memref<1x8x32xf32, #tpu.memory_space<vmem>>, %arg14: memref<8x32xf32, #tpu.memory_space<vmem>>) attributes {dimension_semantics = [#tpu.dimension_semantics<parallel>, #tpu.dimension_semantics<parallel>, #tpu.dimension_semantics<arbitrary>], iteration_bounds = array<i64: 2, 1, 4>, scalar_prefetch = 0 : i64, scratch_operands = 1 : i64, tpu.core_type = #tpu.core_type<tc>, window_params = [{transform_indices = @transform_0, window_bounds = array<i64: 1, 8, 32>}, {transform_indices = @transform_1, window_bounds = array<i64: 1, 8, 32>}, {transform_indices = @transform_2, window_bounds = array<i64: 1, 32, 8>}, {transform_indices = @transform_3, window_bounds = array<i64: 1, 32, 8>}, {transform_indices = @transform_4, window_bounds = array<i64: 1, 32, 8>}, {transform_indices = @transform_5, window_bounds = array<i64: 1, 1, 8>}, {transform_indices = @transform_6, window_bounds = array<i64: 1, 1, 8>}, {transform_indices = @transform_7, window_bounds = array<i64: 1, 1, 8>}, {transform_indices = @transform_8, window_bounds = array<i64: 1, 8, 32>}, {pipeline_mode = #tpu.pipeline_mode<synchronous>, transform_indices = @transform_9, window_bounds = array<i64: 1, 32>}, {transform_indices = @transform_10, window_bounds = array<i64: 1, 8, 32>}]} {
    %c0 = arith.constant 0 : index
    %c0_0 = arith.constant 0 : index
    %c0_1 = arith.constant 0 : index
    %0 = vector.load %arg3[%c0, %c0_0, %c0_1] : memref<1x8x32xf32, #tpu.memory_space<vmem>>, vector<1x8x32xf32>
    %1 = vector.shape_cast %0 : vector<1x8x32xf32> to vector<8x32xf32>
    %c0_2 = arith.constant 0 : index
    %c0_3 = arith.constant 0 : index
    %c0_4 = arith.constant 0 : index
    %2 = vector.load %arg4[%c0_2, %c0_3, %c0_4] : memref<1x8x32xf32, #tpu.memory_space<vmem>>, vector<1x8x32xf32>
    %3 = vector.shape_cast %2 : vector<1x8x32xf32> to vector<8x32xf32>
    %c0_5 = arith.constant 0 : index
    %c0_6 = arith.constant 0 : index
    %c0_7 = arith.constant 0 : index
    %4 = vector.load %arg5[%c0_5, %c0_6, %c0_7] : memref<1x32x8xf32, #tpu.memory_space<vmem>>, vector<1x32x8xf32>
    %5 = vector.shape_cast %4 : vector<1x32x8xf32> to vector<32x8xf32>
    %cst = arith.constant dense<0.000000e+00> : vector<8x8xf32>
    %6 = tpu.matmul %1, %5, %cst {dimension_numbers = #tpu.dot_dimension_numbers<[1], [0], [0], [1], [0, 0, 1, 1], [], []>} : vector<8x32xf32>, vector<32x8xf32>, vector<8x8xf32> -> vector<8x8xf32>
    %c0_8 = arith.constant 0 : index
    %c0_9 = arith.constant 0 : index
    %c0_10 = arith.constant 0 : index
    %7 = vector.load %arg8[%c0_8, %c0_9, %c0_10] : memref<1x1x8xf32, #tpu.memory_space<vmem>>, vector<1x1x8xf32>
    %8 = vector.shape_cast %7 : vector<1x1x8xf32> to vector<1x8xf32>
    %9 = vector.broadcast %8 : vector<1x8xf32> to vector<8x8xf32>
    %10 = arith.addf %6, %9 : vector<8x8xf32>
    %cst_11 = arith.constant 0.353553385 : f32
    %11 = vector.broadcast %cst_11 : f32 to vector<8x8xf32>
    %12 = arith.mulf %10, %11 : vector<8x8xf32>
    %c0_12 = arith.constant 0 : index
    %c0_13 = arith.constant 0 : index
    %c0_14 = arith.constant 0 : index
    %13 = vector.load %arg6[%c0_12, %c0_13, %c0_14] : memref<1x32x8xf32, #tpu.memory_space<vmem>>, vector<1x32x8xf32>
    %14 = vector.shape_cast %13 : vector<1x32x8xf32> to vector<32x8xf32>
    %cst_15 = arith.constant dense<0.000000e+00> : vector<8x8xf32>
    %15 = tpu.matmul %3, %14, %cst_15 {dimension_numbers = #tpu.dot_dimension_numbers<[1], [0], [0], [1], [0, 0, 1, 1], [], []>} : vector<8x32xf32>, vector<32x8xf32>, vector<8x8xf32> -> vector<8x8xf32>
    %c0_16 = arith.constant 0 : index
    %c0_17 = arith.constant 0 : index
    %c0_18 = arith.constant 0 : index
    %16 = vector.load %arg9[%c0_16, %c0_17, %c0_18] : memref<1x1x8xf32, #tpu.memory_space<vmem>>, vector<1x1x8xf32>
    %17 = vector.shape_cast %16 : vector<1x1x8xf32> to vector<1x8xf32>
    %18 = vector.broadcast %17 : vector<1x8xf32> to vector<8x8xf32>
    %19 = arith.addf %15, %18 : vector<8x8xf32>
    %c0_19 = arith.constant 0 : index
    %c0_20 = arith.constant 0 : index
    %c0_21 = arith.constant 0 : index
    %20 = vector.load %arg7[%c0_19, %c0_20, %c0_21] : memref<1x32x8xf32, #tpu.memory_space<vmem>>, vector<1x32x8xf32>
    %21 = vector.shape_cast %20 : vector<1x32x8xf32> to vector<32x8xf32>
    %cst_22 = arith.constant dense<0.000000e+00> : vector<8x8xf32>
    %22 = tpu.matmul %3, %21, %cst_22 {dimension_numbers = #tpu.dot_dimension_numbers<[1], [0], [0], [1], [0, 0, 1, 1], [], []>} : vector<8x32xf32>, vector<32x8xf32>, vector<8x8xf32> -> vector<8x8xf32>
    %c0_23 = arith.constant 0 : index
    %c0_24 = arith.constant 0 : index
    %c0_25 = arith.constant 0 : index
    %23 = vector.load %arg10[%c0_23, %c0_24, %c0_25] : memref<1x1x8xf32, #tpu.memory_space<vmem>>, vector<1x1x8xf32>
    %24 = vector.shape_cast %23 : vector<1x1x8xf32> to vector<1x8xf32>
    %25 = vector.broadcast %24 : vector<1x8xf32> to vector<8x8xf32>
    %26 = arith.addf %22, %25 : vector<8x8xf32>
    %cst_26 = arith.constant dense<0.000000e+00> : vector<8x8xf32>
    %27 = tpu.matmul %12, %19, %cst_26 {dimension_numbers = #tpu.dot_dimension_numbers<[1], [1], [0], [0], [0, 0, 1, 0], [], []>} : vector<8x8xf32>, vector<8x8xf32>, vector<8x8xf32> -> vector<8x8xf32>
    %cst_27 = arith.constant dense<0xFF800000> : vector<8xf32>
    %28 = vector.multi_reduction <maximumf>, %27, %cst_27 [1] : vector<8x8xf32> to vector<8xf32>
    %29 = vector.shape_cast %28 : vector<8xf32> to vector<8x1xf32>
    %30 = vector.broadcast %29 : vector<8x1xf32> to vector<8x8xf32>
    %31 = arith.subf %27, %30 : vector<8x8xf32>
    %32 = math.exp %31 : vector<8x8xf32>
    %cst_28 = arith.constant dense<0.000000e+00> : vector<8xf32>
    %33 = vector.multi_reduction <add>, %32, %cst_28 [1] : vector<8x8xf32> to vector<8xf32>
    %34 = vector.shape_cast %33 : vector<8xf32> to vector<8x1xf32>
    %35 = tpu.reciprocal %34 {approx = true} : vector<8x1xf32> -> vector<8x1xf32>
    %36 = vector.broadcast %35 : vector<8x1xf32> to vector<8x8xf32>
    %37 = arith.mulf %32, %36 : vector<8x8xf32>
    %cst_29 = arith.constant dense<0.000000e+00> : vector<8x8xf32>
    %38 = tpu.matmul %37, %26, %cst_29 {dimension_numbers = #tpu.dot_dimension_numbers<[1], [0], [0], [1], [0, 0, 1, 1], [], []>} : vector<8x8xf32>, vector<8x8xf32>, vector<8x8xf32> -> vector<8x8xf32>
    %c0_30 = arith.constant 0 : index
    %c0_31 = arith.constant 0 : index
    %c0_32 = arith.constant 0 : index
    %39 = vector.load %arg11[%c0_30, %c0_31, %c0_32] : memref<1x8x32xf32, #tpu.memory_space<vmem>>, vector<1x8x32xf32>
    %40 = vector.shape_cast %39 : vector<1x8x32xf32> to vector<8x32xf32>
    %cst_33 = arith.constant dense<0.000000e+00> : vector<8x32xf32>
    %41 = tpu.matmul %38, %40, %cst_33 {dimension_numbers = #tpu.dot_dimension_numbers<[1], [0], [0], [1], [0, 0, 1, 1], [], []>} : vector<8x8xf32>, vector<8x32xf32>, vector<8x32xf32> -> vector<8x32xf32>
    %c0_i32 = arith.constant 0 : i32
    %42 = arith.cmpi eq, %arg2, %c0_i32 : i32
    %43 = arith.extui %42 : i1 to i32
    %c0_i32_34 = arith.constant 0 : i32
    %44 = arith.cmpi ne, %43, %c0_i32_34 : i32
    scf.if %44 {
      %cst_40 = arith.constant 0.000000e+00 : f32
      %51 = vector.broadcast %cst_40 : f32 to vector<8x32xf32>
      %c0_41 = arith.constant 0 : index
      %c0_42 = arith.constant 0 : index
      %52 = vector.load %arg14[%c0_41, %c0_42] : memref<8x32xf32, #tpu.memory_space<vmem>>, vector<8x32xf32>
      tpu.vector_store %arg14[%c0_41, %c0_42], %51 {strides = array<i32>} : memref<8x32xf32, #tpu.memory_space<vmem>>, vector<8x32xf32>,
    } else {
    }
    %c0_35 = arith.constant 0 : index
    %c0_36 = arith.constant 0 : index
    %45 = vector.load %arg14[%c0_35, %c0_36] : memref<8x32xf32, #tpu.memory_space<vmem>>, vector<8x32xf32>
    %46 = arith.addf %45, %41 : vector<8x32xf32>
    %c0_37 = arith.constant 0 : index
    %c0_38 = arith.constant 0 : index
    %47 = vector.load %arg14[%c0_37, %c0_38] : memref<8x32xf32, #tpu.memory_space<vmem>>, vector<8x32xf32>
    tpu.vector_store %arg14[%c0_37, %c0_38], %46 {strides = array<i32>} : memref<8x32xf32, #tpu.memory_space<vmem>>, vector<8x32xf32>,
    %c3_i32 = arith.constant 3 : i32
    %48 = arith.cmpi eq, %arg2, %c3_i32 : i32
    %49 = arith.extui %48 : i1 to i32
    %c0_i32_39 = arith.constant 0 : i32
    %50 = arith.cmpi ne, %49, %c0_i32_39 : i32
    scf.if %50 {
      %c0_40 = arith.constant 0 : index
      %c0_41 = arith.constant 0 : index
      %51 = vector.load %arg14[%c0_40, %c0_41] : memref<8x32xf32, #tpu.memory_space<vmem>>, vector<8x32xf32>
      %c0_42 = arith.constant 0 : index
      %c0_43 = arith.constant 0 : index
      %52 = vector.load %arg12[%c0_42, %c0_43] : memref<1x32xf32, #tpu.memory_space<vmem>>, vector<1x32xf32>
      %53 = vector.broadcast %52 : vector<1x32xf32> to vector<8x32xf32>
      %54 = arith.addf %51, %53 : vector<8x32xf32>
      %c0_44 = arith.constant 0 : index
      %c0_45 = arith.constant 0 : index
      %c0_46 = arith.constant 0 : index
      %55 = vector.load %arg13[%c0_44, %c0_45, %c0_46] : memref<1x8x32xf32, #tpu.memory_space<vmem>>, vector<1x8x32xf32>
      %56 = vector.shape_cast %55 : vector<1x8x32xf32> to vector<8x32xf32>
      %57 = vector.shape_cast %54 : vector<8x32xf32> to vector<1x8x32xf32>
      tpu.vector_store %arg13[%c0_44, %c0_45, %c0_46], %57 {strides = array<i32>} : memref<1x8x32xf32, #tpu.memory_space<vmem>>, vector<1x8x32xf32>,
    } else {
    }
    return
  }
  func.func @transform_0(%arg0: i32, %arg1: i32, %arg2: i32) -> (i32, i32, i32) {
    %c0_i32 = arith.constant 0 : i32
    %c0_i32_0 = arith.constant 0 : i32
    return %arg0, %arg1, %c0_i32 : i32, i32, i32
  }
  func.func @transform_1(%arg0: i32, %arg1: i32, %arg2: i32) -> (i32, i32, i32) {
    %c0_i32 = arith.constant 0 : i32
    %c0_i32_0 = arith.constant 0 : i32
    %c0_i32_1 = arith.constant 0 : i32
    return %arg0, %c0_i32, %c0_i32_0 : i32, i32, i32
  }
  func.func @transform_2(%arg0: i32, %arg1: i32, %arg2: i32) -> (i32, i32, i32) {
    %c0_i32 = arith.constant 0 : i32
    %c0_i32_0 = arith.constant 0 : i32
    %c0_i32_1 = arith.constant 0 : i32
    return %arg2, %c0_i32, %c0_i32_0 : i32, i32, i32
  }
  func.func @transform_3(%arg0: i32, %arg1: i32, %arg2: i32) -> (i32, i32, i32) {
    %c0_i32 = arith.constant 0 : i32
    %c0_i32_0 = arith.constant 0 : i32
    %c0_i32_1 = arith.constant 0 : i32
    return %arg2, %c0_i32, %c0_i32_0 : i32, i32, i32
  }
  func.func @transform_4(%arg0: i32, %arg1: i32, %arg2: i32) -> (i32, i32, i32) {
    %c0_i32 = arith.constant 0 : i32
    %c0_i32_0 = arith.constant 0 : i32
    %c0_i32_1 = arith.constant 0 : i32
    return %arg2, %c0_i32, %c0_i32_0 : i32, i32, i32
  }
  func.func @transform_5(%arg0: i32, %arg1: i32, %arg2: i32) -> (i32, i32, i32) {
    %c0_i32 = arith.constant 0 : i32
    %c0_i32_0 = arith.constant 0 : i32
    %c0_i32_1 = arith.constant 0 : i32
    return %arg2, %c0_i32, %c0_i32_0 : i32, i32, i32
  }
  func.func @transform_6(%arg0: i32, %arg1: i32, %arg2: i32) -> (i32, i32, i32) {
    %c0_i32 = arith.constant 0 : i32
    %c0_i32_0 = arith.constant 0 : i32
    %c0_i32_1 = arith.constant 0 : i32
    return %arg2, %c0_i32, %c0_i32_0 : i32, i32, i32
  }
  func.func @transform_7(%arg0: i32, %arg1: i32, %arg2: i32) -> (i32, i32, i32) {
    %c0_i32 = arith.constant 0 : i32
    %c0_i32_0 = arith.constant 0 : i32
    %c0_i32_1 = arith.constant 0 : i32
    return %arg2, %c0_i32, %c0_i32_0 : i32, i32, i32
  }
  func.func @transform_8(%arg0: i32, %arg1: i32, %arg2: i32) -> (i32, i32, i32) {
    %c0_i32 = arith.constant 0 : i32
    %c0_i32_0 = arith.constant 0 : i32
    %c0_i32_1 = arith.constant 0 : i32
    return %arg2, %c0_i32, %c0_i32_0 : i32, i32, i32
  }
  func.func @transform_9(%arg0: i32, %arg1: i32, %arg2: i32) -> (i32, i32) {
    %c0_i32 = arith.constant 0 : i32
    %c0_i32_0 = arith.constant 0 : i32
    %c0_i32_1 = arith.constant 0 : i32
    return %c0_i32, %c0_i32_0 : i32, i32
  }
  func.func @transform_10(%arg0: i32, %arg1: i32, %arg2: i32) -> (i32, i32, i32) {
    %c0_i32 = arith.constant 0 : i32
    %c0_i32_0 = arith.constant 0 : i32
    return %arg0, %arg1, %c0_i32 : i32, i32, i32
  }
}

</mosaic_0001>

<llo_original>
// kernel: tpu_custom_call.1
$region0: #{tpu_custom_call.1}
  #allocation0 [shape = 'u32[]', space=smem, size = 0x4, offset = 0x4, fixed_abs, tag = 'smem constant byte address 0x4 - core index']
  #allocation1 [shape = 'u32[72,128]{1,0:T(1,128)}', space=vmem, size = 0x9000, scoped, tag = 'internal scratch']
  #allocation2 [shape = 'f32[8,32]{1,0:T(8,128)}', space=vmem, size = 0x1000, scoped, tag = 'scratch operand']
  %s0 = inlined_call_operand.vmem [shape: f32[2,8,32], index: 0, kind: input, shape index: {}]
  %s1 = inlined_call_operand.vmem [shape: f32[2,8,32], index: 1, kind: input, shape index: {}]
  %s2 = inlined_call_operand.vmem [shape: f32[4,32,8], index: 2, kind: input, shape index: {}]
  %s3 = inlined_call_operand.vmem [shape: f32[4,32,8], index: 3, kind: input, shape index: {}]
  %s4 = inlined_call_operand.vmem [shape: f32[4,32,8], index: 4, kind: input, shape index: {}]
  %s5 = inlined_call_operand.vmem [shape: f32[4,1,8], index: 5, kind: input, shape index: {}]
  %s6 = inlined_call_operand.vmem [shape: f32[4,1,8], index: 6, kind: input, shape index: {}]
  %s7 = inlined_call_operand.vmem [shape: f32[4,1,8], index: 7, kind: input, shape index: {}]
  %s8 = inlined_call_operand.vmem [shape: f32[4,8,32], index: 8, kind: input, shape index: {}]
  %s9 = inlined_call_operand.vmem [shape: f32[1,32], index: 9, kind: input, shape index: {}]
  %s10 = inlined_call_operand.hbm [shape: f32[2,8,32], index: 10, kind: output, shape index: {}]
  %s11 = sld [smem:[#allocation0]]
  $region81: #{tpu_custom_call.1} parent=0
    _
  %s13 = ssub.s32 1, %s11
  %s14 = scalar_select 0, %s13, %s11
  $region1: #{tpu_custom_call.1} parent=0
    #allocation3 [shape = 'u8[8192]{0}', space=vmem, size = 0x2000, scoped, tag = 'output window, operand 0']
    #allocation4 [shape = 's32[2]{0}', space=sflag, size = 0x8, scoped, tag = 'scoped memory for tpu_custom_call.1']
    %15 = vsyncpa [#allocation4], 0
    %s16 = scalar_lea.sflag [#allocation4], 1
    %17 = vsyncpa %s16, 0
    loop: start=0, step=1, limit=10
    $region2: #{tpu_custom_call.1} parent=1 // loop_pre_header
      _
    $region3: #{tpu_custom_call.1} parent=1 // loop_header
      %s19 = sphi 0, %s23
      %p20 = scmp.ge.s32.totalorder %s19, 10
      %s26 = sphi 0, %s45
      %s27 = sphi 0, %s41
      %s28 = sphi 0, %s37
      %s29 = sphi 0, %s26
      %s30 = sphi 0, %s27
      %s31 = sphi 0, %s28
      %s32 = sphi 0, %s29
      %s33 = sphi 0, %s30
      %s34 = sphi 0, %s31
      %s50 = sphi 0, %s52
      %s53 = sphi 0, %s50
      %s54 = sphi 0, %s53
      %s70 = sphi 0, %s54
      %s76 = sphi 0, %s78
      %s79 = sphi 0, %s76
      %s80 = sphi 0, %s79
      %s96 = sphi 0, %s80
      %s102 = sphi 0, %s104
      %s105 = sphi 0, %s102
      %s106 = sphi 0, %s105
      %s122 = sphi 0, %s106
      %s128 = sphi 0, %s130
      %s131 = sphi 0, %s128
      %s132 = sphi 0, %s131
      %s148 = sphi 0, %s132
      %s154 = sphi 0, %s156
      %s157 = sphi 0, %s154
      %s158 = sphi 0, %s157
      %s174 = sphi 0, %s158
      %s180 = sphi 0, %s182
      %s183 = sphi 0, %s180
      %s184 = sphi 0, %s183
      %s200 = sphi 0, %s184
      %s206 = sphi 0, %s208
      %s209 = sphi 0, %s206
      %s210 = sphi 0, %s209
      %s226 = sphi 0, %s210
      %s232 = sphi 0, %s234
      %s235 = sphi 0, %s232
      %s236 = sphi 0, %s235
      %s252 = sphi 0, %s236
      %s258 = sphi 0, %s260
      %s261 = sphi 0, %s258
      %s262 = sphi 0, %s261
      %s278 = sphi 0, %s262
      %s282 = sphi 0, %s282
      %s284 = sphi 0, %s282
      %s285 = sphi 0, %s284
      %s299 = sphi 0, %s285
      %s307 = sphi 0, %s309
      %s310 = sphi 0, %s307
      %s311 = sphi 0, %s310
      %s327 = sphi 0, %s311
    $region4: #{tpu_custom_call.1} parent=1 // loop_header_branch
      %22 = sbr.rel (%p20) target = $region8
    $region5: #{tpu_custom_call.1} parent=1 // loop_body
      %s24 = ssub.s32 %s19, 1
      %s25 = ssub.s32 %s19, 2
      %s35 = sadd.s32 1, %s28
      %p36 = scmp.ge.s32.totalorder %s35, 4
      %s37 = scalar_select %p36, 0, %s35
      %s38 = sadd.s32 1, %s27
      %s39 = scalar_select %p36, %s38, %s27
      %p40 = scmp.ge.s32.totalorder %s39, 1
      %s41 = scalar_select %p40, 0, %s39
      %s42 = sadd.s32 1, %s26
      %s43 = scalar_select %p40, %s42, %s26
      %p44 = scmp.ge.s32.totalorder %s43, 2
      %s45 = scalar_select %p44, 0, %s43
      %s46 = ssub.s32 %s26, %s45
      %s47 = ssub.s32 %s27, %s41
      %s48 = sor.u32 %s46, %s47
      %p49 = scmp.eq.s32.totalorder %s48, 0
      %s51 = sadd.s32 %s50, 1
      %s52 = scalar_select %p49, %s50, %s51
      %p55 = pneg %p49
      %p56 = scmp.eq.s32.totalorder %s19, 7
      %p57 = por %p55, %p56
      %p58 = scmp.ne.s32.totalorder %s50, %s53
      %p59 = scmp.eq.s32.totalorder %s19, 0
      %p60 = por %p58, %p59
      %p61 = scmp.ne.s32.totalorder %s50, %s53
      %p62 = scmp.eq.s32.totalorder %s24, 7
      %p63 = por %p61, %p62
      %p64 = scmp.ne.s32.totalorder %s53, %s54
      %p65 = scmp.eq.s32.totalorder %s24, 0
      %p66 = por %p64, %p65
      %p67 = scmp.ne.s32.totalorder %s53, %s54
      %p68 = scmp.eq.s32.totalorder %s25, 7
      %p69 = por %p67, %p68
      %p71 = scmp.ne.s32.totalorder %s54, %s70
      %p72 = scmp.eq.s32.totalorder %s25, 0
      %p73 = por %p71, %p72
      %s74 = ssub.s32 %s26, %s45
      %p75 = scmp.eq.s32.totalorder %s74, 0
      %s77 = sadd.s32 %s76, 1
      %s78 = scalar_select %p75, %s76, %s77
      %p81 = pneg %p75
      %p82 = scmp.eq.s32.totalorder %s19, 7
      %p83 = por %p81, %p82
      %p84 = scmp.ne.s32.totalorder %s76, %s79
      %p85 = scmp.eq.s32.totalorder %s19, 0
      %p86 = por %p84, %p85
      %p87 = scmp.ne.s32.totalorder %s76, %s79
      %p88 = scmp.eq.s32.totalorder %s24, 7
      %p89 = por %p87, %p88
      %p90 = scmp.ne.s32.totalorder %s79, %s80
      %p91 = scmp.eq.s32.totalorder %s24, 0
      %p92 = por %p90, %p91
      %p93 = scmp.ne.s32.totalorder %s79, %s80
      %p94 = scmp.eq.s32.totalorder %s25, 7
      %p95 = por %p93, %p94
      %p97 = scmp.ne.s32.totalorder %s80, %s96
      %p98 = scmp.eq.s32.totalorder %s25, 0
      %p99 = por %p97, %p98
      %s100 = ssub.s32 %s28, %s37
      %p101 = scmp.eq.s32.totalorder %s100, 0
      %s103 = sadd.s32 %s102, 1
      %s104 = scalar_select %p101, %s102, %s103
      %p107 = pneg %p101
      %p108 = scmp.eq.s32.totalorder %s19, 7
      %p109 = por %p107, %p108
      %p110 = scmp.ne.s32.totalorder %s102, %s105
      %p111 = scmp.eq.s32.totalorder %s19, 0
      %p112 = por %p110, %p111
      %p113 = scmp.ne.s32.totalorder %s102, %s105
      %p114 = scmp.eq.s32.totalorder %s24, 7
      %p115 = por %p113, %p114
      %p116 = scmp.ne.s32.totalorder %s105, %s106
      %p117 = scmp.eq.s32.totalorder %s24, 0
      %p118 = por %p116, %p117
      %p119 = scmp.ne.s32.totalorder %s105, %s106
      %p120 = scmp.eq.s32.totalorder %s25, 7
      %p121 = por %p119, %p120
      %p123 = scmp.ne.s32.totalorder %s106, %s122
      %p124 = scmp.eq.s32.totalorder %s25, 0
      %p125 = por %p123, %p124
      %s126 = ssub.s32 %s28, %s37
      %p127 = scmp.eq.s32.totalorder %s126, 0
      %s129 = sadd.s32 %s128, 1
      %s130 = scalar_select %p127, %s128, %s129
      %p133 = pneg %p127
      %p134 = scmp.eq.s32.totalorder %s19, 7
      %p135 = por %p133, %p134
      %p136 = scmp.ne.s32.totalorder %s128, %s131
      %p137 = scmp.eq.s32.totalorder %s19, 0
      %p138 = por %p136, %p137
      %p139 = scmp.ne.s32.totalorder %s128, %s131
      %p140 = scmp.eq.s32.totalorder %s24, 7
      %p141 = por %p139, %p140
      %p142 = scmp.ne.s32.totalorder %s131, %s132
      %p143 = scmp.eq.s32.totalorder %s24, 0
      %p144 = por %p142, %p143
      %p145 = scmp.ne.s32.totalorder %s131, %s132
      %p146 = scmp.eq.s32.totalorder %s25, 7
      %p147 = por %p145, %p146
      %p149 = scmp.ne.s32.totalorder %s132, %s148
      %p150 = scmp.eq.s32.totalorder %s25, 0
      %p151 = por %p149, %p150
      %s152 = ssub.s32 %s28, %s37
      %p153 = scmp.eq.s32.totalorder %s152, 0
      %s155 = sadd.s32 %s154, 1
      %s156 = scalar_select %p153, %s154, %s155
      %p159 = pneg %p153
      %p160 = scmp.eq.s32.totalorder %s19, 7
      %p161 = por %p159, %p160
      %p162 = scmp.ne.s32.totalorder %s154, %s157
      %p163 = scmp.eq.s32.totalorder %s19, 0
      %p164 = por %p162, %p163
      %p165 = scmp.ne.s32.totalorder %s154, %s157
      %p166 = scmp.eq.s32.totalorder %s24, 7
      %p167 = por %p165, %p166
      %p168 = scmp.ne.s32.totalorder %s157, %s158
      %p169 = scmp.eq.s32.totalorder %s24, 0
      %p170 = por %p168, %p169
      %p171 = scmp.ne.s32.totalorder %s157, %s158
      %p172 = scmp.eq.s32.totalorder %s25, 7
      %p173 = por %p171, %p172
      %p175 = scmp.ne.s32.totalorder %s158, %s174
      %p176 = scmp.eq.s32.totalorder %s25, 0
      %p177 = por %p175, %p176
      %s178 = ssub.s32 %s28, %s37
      %p179 = scmp.eq.s32.totalorder %s178, 0
      %s181 = sadd.s32 %s180, 1
      %s182 = scalar_select %p179, %s180, %s181
      %p185 = pneg %p179
      %p186 = scmp.eq.s32.totalorder %s19, 7
      %p187 = por %p185, %p186
      %p188 = scmp.ne.s32.totalorder %s180, %s183
      %p189 = scmp.eq.s32.totalorder %s19, 0
      %p190 = por %p188, %p189
      %p191 = scmp.ne.s32.totalorder %s180, %s183
      %p192 = scmp.eq.s32.totalorder %s24, 7
      %p193 = por %p191, %p192
      %p194 = scmp.ne.s32.totalorder %s183, %s184
      %p195 = scmp.eq.s32.totalorder %s24, 0
      %p196 = por %p194, %p195
      %p197 = scmp.ne.s32.totalorder %s183, %s184
      %p198 = scmp.eq.s32.totalorder %s25, 7
      %p199 = por %p197, %p198
      %p201 = scmp.ne.s32.totalorder %s184, %s200
      %p202 = scmp.eq.s32.totalorder %s25, 0
      %p203 = por %p201, %p202
      %s204 = ssub.s32 %s28, %s37
      %p205 = scmp.eq.s32.totalorder %s204, 0
      %s207 = sadd.s32 %s206, 1
      %s208 = scalar_select %p205, %s206, %s207
      %p211 = pneg %p205
      %p212 = scmp.eq.s32.totalorder %s19, 7
      %p213 = por %p211, %p212
      %p214 = scmp.ne.s32.totalorder %s206, %s209
      %p215 = scmp.eq.s32.totalorder %s19, 0
      %p216 = por %p214, %p215
      %p217 = scmp.ne.s32.totalorder %s206, %s209
      %p218 = scmp.eq.s32.totalorder %s24, 7
      %p219 = por %p217, %p218
      %p220 = scmp.ne.s32.totalorder %s209, %s210
      %p221 = scmp.eq.s32.totalorder %s24, 0
      %p222 = por %p220, %p221
      %p223 = scmp.ne.s32.totalorder %s209, %s210
      %p224 = scmp.eq.s32.totalorder %s25, 7
      %p225 = por %p223, %p224
      %p227 = scmp.ne.s32.totalorder %s210, %s226
      %p228 = scmp.eq.s32.totalorder %s25, 0
      %p229 = por %p227, %p228
      %s230 = ssub.s32 %s28, %s37
      %p231 = scmp.eq.s32.totalorder %s230, 0
      %s233 = sadd.s32 %s232, 1
      %s234 = scalar_select %p231, %s232, %s233
      %p237 = pneg %p231
      %p238 = scmp.eq.s32.totalorder %s19, 7
      %p239 = por %p237, %p238
      %p240 = scmp.ne.s32.totalorder %s232, %s235
      %p241 = scmp.eq.s32.totalorder %s19, 0
      %p242 = por %p240, %p241
      %p243 = scmp.ne.s32.totalorder %s232, %s235
      %p244 = scmp.eq.s32.totalorder %s24, 7
      %p245 = por %p243, %p244
      %p246 = scmp.ne.s32.totalorder %s235, %s236
      %p247 = scmp.eq.s32.totalorder %s24, 0
      %p248 = por %p246, %p247
      %p249 = scmp.ne.s32.totalorder %s235, %s236
      %p250 = scmp.eq.s32.totalorder %s25, 7
      %p251 = por %p249, %p250
      %p253 = scmp.ne.s32.totalorder %s236, %s252
      %p254 = scmp.eq.s32.totalorder %s25, 0
      %p255 = por %p253, %p254
      %s256 = ssub.s32 %s28, %s37
      %p257 = scmp.eq.s32.totalorder %s256, 0
      %s259 = sadd.s32 %s258, 1
      %s260 = scalar_select %p257, %s258, %s259
      %p263 = pneg %p257
      %p264 = scmp.eq.s32.totalorder %s19, 7
      %p265 = por %p263, %p264
      %p266 = scmp.ne.s32.totalorder %s258, %s261
      %p267 = scmp.eq.s32.totalorder %s19, 0
      %p268 = por %p266, %p267
      %p269 = scmp.ne.s32.totalorder %s258, %s261
      %p270 = scmp.eq.s32.totalorder %s24, 7
      %p271 = por %p269, %p270
      %p272 = scmp.ne.s32.totalorder %s261, %s262
      %p273 = scmp.eq.s32.totalorder %s24, 0
      %p274 = por %p272, %p273
      %p275 = scmp.ne.s32.totalorder %s261, %s262
      %p276 = scmp.eq.s32.totalorder %s25, 7
      %p277 = por %p275, %p276
      %p279 = scmp.ne.s32.totalorder %s262, %s278
      %p280 = scmp.eq.s32.totalorder %s25, 0
      %p281 = por %p279, %p280
      %s283 = sadd.s32 %s282, 1
      %p286 = scmp.eq.s32.totalorder %s19, 7
      %p287 = scmp.ne.s32.totalorder %s282, %s284
      %p288 = scmp.eq.s32.totalorder %s19, 0
      %p289 = por %p287, %p288
      %p290 = scmp.ne.s32.totalorder %s282, %s284
      %p291 = scmp.eq.s32.totalorder %s24, 7
      %p292 = por %p290, %p291
      %p293 = scmp.ne.s32.totalorder %s284, %s285
      %p294 = scmp.eq.s32.totalorder %s24, 0
      %p295 = por %p293, %p294
      %p296 = scmp.ne.s32.totalorder %s284, %s285
      %p297 = scmp.eq.s32.totalorder %s25, 7
      %p298 = por %p296, %p297
      %p300 = scmp.ne.s32.totalorder %s285, %s299
      %p301 = scmp.eq.s32.totalorder %s25, 0
      %p302 = por %p300, %p301
      %s303 = ssub.s32 %s26, %s45
      %s304 = ssub.s32 %s27, %s41
      %s305 = sor.u32 %s303, %s304
      %p306 = scmp.eq.s32.totalorder %s305, 0
      %s308 = sadd.s32 %s307, 1
      %s309 = scalar_select %p306, %s307, %s308
      %p312 = pneg %p306
      %p313 = scmp.eq.s32.totalorder %s19, 7
      %p314 = por %p312, %p313
      %p315 = scmp.ne.s32.totalorder %s307, %s310
      %p316 = scmp.eq.s32.totalorder %s19, 0
      %p317 = por %p315, %p316
      %p318 = scmp.ne.s32.totalorder %s307, %s310
      %p319 = scmp.eq.s32.totalorder %s24, 7
      %p320 = por %p318, %p319
      %p321 = scmp.ne.s32.totalorder %s310, %s311
      %p322 = scmp.eq.s32.totalorder %s24, 0
      %p323 = por %p321, %p322
      %p324 = scmp.ne.s32.totalorder %s310, %s311
      %p325 = scmp.eq.s32.totalorder %s25, 7
      %p326 = por %p324, %p325
      %p328 = scmp.ne.s32.totalorder %s311, %s327
      %p329 = scmp.eq.s32.totalorder %s25, 0
      %p330 = por %p328, %p329
      %p331 = scmp.le.s32.totalorder 1, %s19
      %p332 = scmp.lt.s32.totalorder %s19, 9
      %p333 = pnand %p331, %p332
      %p334 = pneg %p333
      // Predicated region
      $region9: #{tpu_custom_call.1} parent=5 // pred_check
        _
      $region10: #{tpu_custom_call.1} parent=5 // pred_check_branch
        %336 = sbr.rel (%p333) target = $region12
      $region11: #{tpu_custom_call.1} parent=5 // pred_region
        %s337 = ssub.s32 %s19, 1
        // Predicated region
        $region13: #{tpu_custom_call.1} parent=11 // pred_check
          %p338 = pneg %p295
        $region14: #{tpu_custom_call.1} parent=11 // pred_check_branch
          %340 = sbr.rel (%p338) target = $region16
        $region15: #{tpu_custom_call.1} parent=11 // pred_region
          _
        $region16: #{tpu_custom_call.1} parent=11 // pred_fallthru
          _
      $region12: #{tpu_custom_call.1} parent=5 // pred_fallthru
        _
      %p341 = scmp.lt.s32.totalorder %s19, 8
      // Predicated region
      $region17: #{tpu_custom_call.1} parent=5 // pred_check
        %p342 = pneg %p341
      $region18: #{tpu_custom_call.1} parent=5 // pred_check_branch
        %344 = sbr.rel (%p342) target = $region20
      $region19: #{tpu_custom_call.1} parent=5 // pred_region
        // Predicated region
        $region21: #{tpu_custom_call.1} parent=19 // pred_check
          %p345 = pneg %p60
        $region22: #{tpu_custom_call.1} parent=19 // pred_check_branch
          %347 = sbr.rel (%p345) target = $region24
        $region23: #{tpu_custom_call.1} parent=19 // pred_region
          %p348 = scmp.lt.s32.totalorder %s26, 1
          %s349 = scalar_select %p348, %s26, 1
          %p350 = scmp.lt.s32.totalorder %s27, 0
          %s351 = scalar_select %p350, %s27, 0
          %s352 = sadd.s32 %s351, %s349
          %s353 = smul.addr %s352, 8
          %s354 = scalar_lea.vmem %s0, %s353
        $region24: #{tpu_custom_call.1} parent=19 // pred_fallthru
          _
        // Predicated region
        $region25: #{tpu_custom_call.1} parent=19 // pred_check
          %p355 = pneg %p86
        $region26: #{tpu_custom_call.1} parent=19 // pred_check_branch
          %357 = sbr.rel (%p355) target = $region28
        $region27: #{tpu_custom_call.1} parent=19 // pred_region
          %p358 = scmp.lt.s32.totalorder %s26, 1
          %s359 = scalar_select %p358, %s26, 1
          %s360 = smul.addr %s359, 8
          %s361 = scalar_lea.vmem %s1, %s360
        $region28: #{tpu_custom_call.1} parent=19 // pred_fallthru
          _
        // Predicated region
        $region29: #{tpu_custom_call.1} parent=19 // pred_check
          %p362 = pneg %p112
        $region30: #{tpu_custom_call.1} parent=19 // pred_check_branch
          %364 = sbr.rel (%p362) target = $region32
        $region31: #{tpu_custom_call.1} parent=19 // pred_region
          %p365 = scmp.lt.s32.totalorder %s28, 3
          %s366 = scalar_select %p365, %s28, 3
          %s367 = smul.addr %s366, 4
          %s368 = smul.addr %s367, 8
          %s369 = scalar_lea.vmem %s2, %s368
        $region32: #{tpu_custom_call.1} parent=19 // pred_fallthru
          _
        // Predicated region
        $region33: #{tpu_custom_call.1} parent=19 // pred_check
          %p370 = pneg %p138
        $region34: #{tpu_custom_call.1} parent=19 // pred_check_branch
          %372 = sbr.rel (%p370) target = $region36
        $region35: #{tpu_custom_call.1} parent=19 // pred_region
          %p373 = scmp.lt.s32.totalorder %s28, 3
          %s374 = scalar_select %p373, %s28, 3
          %s375 = smul.addr %s374, 4
          %s376 = smul.addr %s375, 8
          %s377 = scalar_lea.vmem %s3, %s376
        $region36: #{tpu_custom_call.1} parent=19 // pred_fallthru
          _
        // Predicated region
        $region37: #{tpu_custom_call.1} parent=19 // pred_check
          %p378 = pneg %p164
        $region38: #{tpu_custom_call.1} parent=19 // pred_check_branch
          %380 = sbr.rel (%p378) target = $region40
        $region39: #{tpu_custom_call.1} parent=19 // pred_region
          %p381 = scmp.lt.s32.totalorder %s28, 3
          %s382 = scalar_select %p381, %s28, 3
          %s383 = smul.addr %s382, 4
          %s384 = smul.addr %s383, 8
          %s385 = scalar_lea.vmem %s4, %s384
        $region40: #{tpu_custom_call.1} parent=19 // pred_fallthru
          _
        // Predicated region
        $region41: #{tpu_custom_call.1} parent=19 // pred_check
          %p386 = pneg %p190
        $region42: #{tpu_custom_call.1} parent=19 // pred_check_branch
          %388 = sbr.rel (%p386) target = $region44
        $region43: #{tpu_custom_call.1} parent=19 // pred_region
          %p389 = scmp.lt.s32.totalorder %s28, 3
          %s390 = scalar_select %p389, %s28, 3
          %s391 = scalar_lea.vmem %s5, %s390
        $region44: #{tpu_custom_call.1} parent=19 // pred_fallthru
          _
        // Predicated region
        $region45: #{tpu_custom_call.1} parent=19 // pred_check
          %p392 = pneg %p216
        $region46: #{tpu_custom_call.1} parent=19 // pred_check_branch
          %394 = sbr.rel (%p392) target = $region48
        $region47: #{tpu_custom_call.1} parent=19 // pred_region
          %p395 = scmp.lt.s32.totalorder %s28, 3
          %s396 = scalar_select %p395, %s28, 3
          %s397 = scalar_lea.vmem %s6, %s396
        $region48: #{tpu_custom_call.1} parent=19 // pred_fallthru
          _
        // Predicated region
        $region49: #{tpu_custom_call.1} parent=19 // pred_check
          %p398 = pneg %p242
        $region50: #{tpu_custom_call.1} parent=19 // pred_check_branch
          %400 = sbr.rel (%p398) target = $region52
        $region51: #{tpu_custom_call.1} parent=19 // pred_region
          %p401 = scmp.lt.s32.totalorder %s28, 3
          %s402 = scalar_select %p401, %s28, 3
          %s403 = scalar_lea.vmem %s7, %s402
        $region52: #{tpu_custom_call.1} parent=19 // pred_fallthru
          _
        // Predicated region
        $region53: #{tpu_custom_call.1} parent=19 // pred_check
          %p404 = pneg %p268
        $region54: #{tpu_custom_call.1} parent=19 // pred_check_branch
          %406 = sbr.rel (%p404) target = $region56
        $region55: #{tpu_custom_call.1} parent=19 // pred_region
          %p407 = scmp.lt.s32.totalorder %s28, 3
          %s408 = scalar_select %p407, %s28, 3
          %s409 = smul.addr %s408, 8
          %s410 = scalar_lea.vmem %s8, %s409
        $region56: #{tpu_custom_call.1} parent=19 // pred_fallthru
          _
      $region20: #{tpu_custom_call.1} parent=5 // pred_fallthru
        _
      %p411 = scmp.le.s32.totalorder 1, %s19
      %p412 = scmp.lt.s32.totalorder %s19, 9
      %p413 = pnand %p411, %p412
      %p414 = pneg %p413
      // Predicated region
      $region57: #{tpu_custom_call.1} parent=5 // pred_check
        _
      $region58: #{tpu_custom_call.1} parent=5 // pred_check_branch
        %416 = sbr.rel (%p413) target = $region60
      $region59: #{tpu_custom_call.1} parent=5 // pred_region
        %s417 = ssub.s32 %s19, 1
        %p418 = scmp.lt.s32.totalorder %s29, 1
        %s419 = scalar_select %p418, %s29, 1
        %p420 = scmp.lt.s32.totalorder %s30, 0
        %s421 = scalar_select %p420, %s30, 0
        %s422 = sadd.s32 %s421, %s419
        %s423 = smul.addr %s422, 8
        %s424 = scalar_lea.vmem %s0, %s423
        %p425 = pneg %p66
        %p426 = pneg %p63
        %p427 = scmp.lt.s32.totalorder %s29, 1
        %s428 = scalar_select %p427, %s29, 1
        %s429 = smul.addr %s428, 8
        %s430 = scalar_lea.vmem %s1, %s429
        %p431 = pneg %p92
        %p432 = pneg %p89
        %p433 = scmp.lt.s32.totalorder %s31, 3
        %s434 = scalar_select %p433, %s31, 3
        %s435 = smul.addr %s434, 4
        %s436 = smul.addr %s435, 8
        %s437 = scalar_lea.vmem %s2, %s436
        %p438 = pneg %p118
        %p439 = pneg %p115
        %p440 = scmp.lt.s32.totalorder %s31, 3
        %s441 = scalar_select %p440, %s31, 3
        %s442 = smul.addr %s441, 4
        %s443 = smul.addr %s442, 8
        %s444 = scalar_lea.vmem %s3, %s443
        %p445 = pneg %p144
        %p446 = pneg %p141
        %p447 = scmp.lt.s32.totalorder %s31, 3
        %s448 = scalar_select %p447, %s31, 3
        %s449 = smul.addr %s448, 4
        %s450 = smul.addr %s449, 8
        %s451 = scalar_lea.vmem %s4, %s450
        %p452 = pneg %p170
        %p453 = pneg %p167
        %p454 = scmp.lt.s32.totalorder %s31, 3
        %s455 = scalar_select %p454, %s31, 3
        %s456 = scalar_lea.vmem %s5, %s455
        %p457 = pneg %p196
        %p458 = pneg %p193
        %p459 = scmp.lt.s32.totalorder %s31, 3
        %s460 = scalar_select %p459, %s31, 3
        %s461 = scalar_lea.vmem %s6, %s460
        %p462 = pneg %p222
        %p463 = pneg %p219
        %p464 = scmp.lt.s32.totalorder %s31, 3
        %s465 = scalar_select %p464, %s31, 3
        %s466 = scalar_lea.vmem %s7, %s465
        %p467 = pneg %p248
        %p468 = pneg %p245
        %p469 = scmp.lt.s32.totalorder %s31, 3
        %s470 = scalar_select %p469, %s31, 3
        %s471 = smul.addr %s470, 8
        %s472 = scalar_lea.vmem %s8, %s471
        %p473 = pneg %p274
        %p474 = pneg %p271
        %p475 = pneg %p295
        %p476 = pneg %p292
        %p477 = pneg %p323
        %p478 = pneg %p320
        %s479 = sand.u32 %s310, 1
        %s480 = scalar_lea.sflag [#allocation4], %s479
        %s481 = sand.u32 %s310, 1
        %s482 = smul.addr %s481, 8
        %s483 = scalar_lea.vmem [#allocation3], %s482
        %p484 = scmp.lt.s32.totalorder %s29, 1
        %s485 = scalar_select %p484, %s29, 1
        %p486 = scmp.lt.s32.totalorder %s30, 0
        %s487 = scalar_select %p486, %s30, 0
        %s488 = sadd.s32 %s487, %s485
        %s489 = smul.addr %s488, 8
        %s490 = scalar_lea.vmem %s0, %s489
        %p491 = scmp.lt.s32.totalorder %s29, 1
        %s492 = scalar_select %p491, %s29, 1
        %s493 = smul.addr %s492, 8
        %s494 = scalar_lea.vmem %s1, %s493
        %p495 = scmp.lt.s32.totalorder %s31, 3
        %s496 = scalar_select %p495, %s31, 3
        %s497 = smul.addr %s496, 4
        %s498 = smul.addr %s497, 8
        %s499 = scalar_lea.vmem %s2, %s498
        %p500 = scmp.lt.s32.totalorder %s31, 3
        %s501 = scalar_select %p500, %s31, 3
        %s502 = smul.addr %s501, 4
        %s503 = smul.addr %s502, 8
        %s504 = scalar_lea.vmem %s3, %s503
        %p505 = scmp.lt.s32.totalorder %s31, 3
        %s506 = scalar_select %p505, %s31, 3
        %s507 = smul.addr %s506, 4
        %s508 = smul.addr %s507, 8
        %s509 = scalar_lea.vmem %s4, %s508
        %p510 = scmp.lt.s32.totalorder %s31, 3
        %s511 = scalar_select %p510, %s31, 3
        %s512 = scalar_lea.vmem %s5, %s511
        %p513 = scmp.lt.s32.totalorder %s31, 3
        %s514 = scalar_select %p513, %s31, 3
        %s515 = scalar_lea.vmem %s6, %s514
        %p516 = scmp.lt.s32.totalorder %s31, 3
        %s517 = scalar_select %p516, %s31, 3
        %s518 = scalar_lea.vmem %s7, %s517
        %p519 = scmp.lt.s32.totalorder %s31, 3
        %s520 = scalar_select %p519, %s31, 3
        %s521 = smul.addr %s520, 8
        %s522 = scalar_lea.vmem %s8, %s521
        %v523 = vld [vmem:[%s490] sm:$0xff]
        %v524 = vld [vmem:[%s494] sm:$0xff]
        %v525 = vld [vmem:[%s499] sm:$0xff]
        %v526 = vld [vmem:[%s499 + $0x8] sm:$0xff]
        %v527 = vld [vmem:[%s499 + $0x10] sm:$0xff]
        %v528 = vld [vmem:[%s499 + $0x18] sm:$0xff]
        %v529 = vld [vmem:[%s512] sm:$0x1]
        %v531 = vperm.slane %v529, 0
        %vm533 = vcmask 261120
        %v535 = vsel %vm533, %v523, 0
        %537 = vmatpush.msra.mxu0 0.0
        %538 = vmatpush.msra.mxu0 0.0
        %539 = vmatpush.msra.mxu0 0.0
        %540 = vmatpush.msra.mxu0 0.0
        %541 = vmatpush.msra.mxu0 0.0
        %542 = vmatpush.msra.mxu0 0.0
        %543 = vmatpush.msra.mxu0 0.0
        %544 = vmatpush.msra.mxu0 0.0
        %545 = vmatpush.msra.mxu0 0.0
        %546 = vmatpush.msra.mxu0 0.0
        %547 = vmatpush.msra.mxu0 0.0
        %548 = vmatpush.msra.mxu0 0.0
        %549 = vmatpush.msra.mxu0 %v528
        %550 = vmatpush.msra.mxu0 %v527
        %551 = vmatpush.msra.mxu0 %v526
        %552 = vmatpush.msra.mxu0 %v525
        %553 = vmatmul.f32.gmra.mxu0 %v535
        %v554 = vpop.f32.mrf.mxu0
        %v555 = vadd.f32 %v531, %v554
        %556 = vdwg.mxu0
        %v557 = vmul.f32 %v555, 0.35355338
        %v558 = vld [vmem:[%s504] sm:$0xff]
        %v559 = vld [vmem:[%s504 + $0x8] sm:$0xff]
        %v560 = vld [vmem:[%s504 + $0x10] sm:$0xff]
        %v561 = vld [vmem:[%s504 + $0x18] sm:$0xff]
        %v562 = vld [vmem:[%s515] sm:$0x1]
        %v564 = vperm.slane %v562, 0
        %v567 = vsel %vm533, %v524, 0
        %569 = vmatpush.msra.mxu0 0.0
        %570 = vmatpush.msra.mxu0 0.0
        %571 = vmatpush.msra.mxu0 0.0
        %572 = vmatpush.msra.mxu0 0.0
        %573 = vmatpush.msra.mxu0 0.0
        %574 = vmatpush.msra.mxu0 0.0
        %575 = vmatpush.msra.mxu0 0.0
        %576 = vmatpush.msra.mxu0 0.0
        %577 = vmatpush.msra.mxu0 0.0
        %578 = vmatpush.msra.mxu0 0.0
        %579 = vmatpush.msra.mxu0 0.0
        %580 = vmatpush.msra.mxu0 0.0
        %581 = vmatpush.msra.mxu0 %v561
        %582 = vmatpush.msra.mxu0 %v560
        %583 = vmatpush.msra.mxu0 %v559
        %584 = vmatpush.msra.mxu0 %v558
        %585 = vmatmul.f32.gmra.mxu0 %v567
        %v586 = vpop.f32.mrf.mxu0
        %v587 = vadd.f32 %v564, %v586
        %588 = vdwg.mxu0
        %v589 = vld [vmem:[%s509] sm:$0xff]
        %v590 = vld [vmem:[%s509 + $0x8] sm:$0xff]
        %v591 = vld [vmem:[%s509 + $0x10] sm:$0xff]
        %v592 = vld [vmem:[%s509 + $0x18] sm:$0xff]
        %v593 = vld [vmem:[%s518] sm:$0x1]
        %v595 = vperm.slane %v593, 0
        %597 = vmatpush.msra.mxu0 0.0
        %598 = vmatpush.msra.mxu0 0.0
        %599 = vmatpush.msra.mxu0 0.0
        %600 = vmatpush.msra.mxu0 0.0
        %601 = vmatpush.msra.mxu0 0.0
        %602 = vmatpush.msra.mxu0 0.0
        %603 = vmatpush.msra.mxu0 0.0
        %604 = vmatpush.msra.mxu0 0.0
        %605 = vmatpush.msra.mxu0 0.0
        %606 = vmatpush.msra.mxu0 0.0
        %607 = vmatpush.msra.mxu0 0.0
        %608 = vmatpush.msra.mxu0 0.0
        %609 = vmatpush.msra.mxu0 %v592
        %610 = vmatpush.msra.mxu0 %v591
        %611 = vmatpush.msra.mxu0 %v590
        %612 = vmatpush.msra.mxu0 %v589
        %613 = vmatmul.f32.gmra.mxu0 %v567
        %v614 = vpop.f32.mrf.mxu0
        %v615 = vadd.f32 %v595, %v614
        %616 = vdwg.mxu0
        %vm617 = vcmask 64512
        %v619 = vsel %vm617, %v557, 0
        %v622 = vsel %vm617, %v587, 0
        %624 = vmatpush.xpose.msra.mxu0 0.0
        %625 = vmatpush.xpose.msra.mxu0 0.0
        %626 = vmatpush.xpose.msra.mxu0 0.0
        %627 = vmatpush.xpose.msra.mxu0 0.0
        %628 = vmatpush.xpose.msra.mxu0 0.0
        %629 = vmatpush.xpose.msra.mxu0 0.0
        %630 = vmatpush.xpose.msra.mxu0 0.0
        %631 = vmatpush.xpose.msra.mxu0 0.0
        %632 = vmatpush.xpose.msra.mxu0 0.0
        %633 = vmatpush.xpose.msra.mxu0 0.0
        %634 = vmatpush.xpose.msra.mxu0 0.0
        %635 = vmatpush.xpose.msra.mxu0 0.0
        %636 = vmatpush.xpose.msra.mxu0 0.0
        %637 = vmatpush.xpose.msra.mxu0 0.0
        %638 = vmatpush.xpose.msra.mxu0 0.0
        %639 = vmatpush.xpose.msra.mxu0 %v622
        %640 = vmatmul.f32.gmra.mxu0 %v619
        %v641 = vpop.f32.mrf.mxu0
        %v642 = vadd.f32 0.0, %v641
        %643 = vdwg.mxu0
        %v644 = vsel %vm617, %v642, -inf
        %645 = vmax.xlane.f32.xlu0 %v644
        %v646 = vpop.xlane.xlu0 %645
        %v647 = vsub.f32 %v642, %v646
        %v648 = vmul.f32 %v647, 1.442695
        %v649 = vpow.pop %v648
        %v650 = vsel %vm617, %v649, 0.0
        %651 = vadd.xlane.f32.xlu0 %v650
        %v652 = vpop.xlane.xlu0 %651
        %v653 = vrcp.pop %v652
        %v654 = vmul.f32 %v649, %v653
        %v656 = vsel %vm617, %v654, 0
        %658 = vmatpush.msra.mxu0 0.0
        %659 = vmatpush.msra.mxu0 0.0
        %660 = vmatpush.msra.mxu0 0.0
        %661 = vmatpush.msra.mxu0 0.0
        %662 = vmatpush.msra.mxu0 0.0
        %663 = vmatpush.msra.mxu0 0.0
        %664 = vmatpush.msra.mxu0 0.0
        %665 = vmatpush.msra.mxu0 0.0
        %666 = vmatpush.msra.mxu0 0.0
        %667 = vmatpush.msra.mxu0 0.0
        %668 = vmatpush.msra.mxu0 0.0
        %669 = vmatpush.msra.mxu0 0.0
        %670 = vmatpush.msra.mxu0 0.0
        %671 = vmatpush.msra.mxu0 0.0
        %672 = vmatpush.msra.mxu0 0.0
        %673 = vmatpush.msra.mxu0 %v615
        %674 = vmatmul.f32.gmra.mxu0 %v656
        %v675 = vpop.f32.mrf.mxu0
        %v676 = vadd.f32 0.0, %v675
        %677 = vdwg.mxu0
        %v678 = vld [vmem:[%s522] sm:$0xff]
        %v680 = vsel %vm617, %v676, 0
        %682 = vmatpush.msra.mxu0 0.0
        %683 = vmatpush.msra.mxu0 0.0
        %684 = vmatpush.msra.mxu0 0.0
        %685 = vmatpush.msra.mxu0 0.0
        %686 = vmatpush.msra.mxu0 0.0
        %687 = vmatpush.msra.mxu0 0.0
        %688 = vmatpush.msra.mxu0 0.0
        %689 = vmatpush.msra.mxu0 0.0
        %690 = vmatpush.msra.mxu0 0.0
        %691 = vmatpush.msra.mxu0 0.0
        %692 = vmatpush.msra.mxu0 0.0
        %693 = vmatpush.msra.mxu0 0.0
        %694 = vmatpush.msra.mxu0 0.0
        %695 = vmatpush.msra.mxu0 0.0
        %696 = vmatpush.msra.mxu0 0.0
        %697 = vmatpush.msra.mxu0 %v678
        %698 = vmatmul.f32.gmra.mxu0 %v680
        %v699 = vpop.f32.mrf.mxu0
        %v700 = vadd.f32 0.0, %v699
        %701 = vdwg.mxu0
        %p702 = scmp.eq.s32.totalorder %s31, 0
        // Predicated region
        $region61: #{tpu_custom_call.1} parent=59 // pred_check
          %p703 = pneg %p702
        $region62: #{tpu_custom_call.1} parent=59 // pred_check_branch
          %705 = sbr.rel (%p703) target = $region64
        $region63: #{tpu_custom_call.1} parent=59 // pred_region
          %706 = vst.msk [vmem:[#allocation2] sm:$0xff] %vm533, 0.0
        $region64: #{tpu_custom_call.1} parent=59 // pred_fallthru
          _
        %v707 = vld [vmem:[#allocation2] sm:$0xff]
        %v708 = vadd.f32 %v707, %v700
        %709 = vst.msk [vmem:[#allocation2] sm:$0xff] %vm533, %v708
        %p710 = scmp.eq.s32.totalorder %s31, 3
        // Predicated region
        $region65: #{tpu_custom_call.1} parent=59 // pred_check
          %p711 = pneg %p710
        $region66: #{tpu_custom_call.1} parent=59 // pred_check_branch
          %713 = sbr.rel (%p711) target = $region68
        $region67: #{tpu_custom_call.1} parent=59 // pred_region
          %v714 = vld [vmem:[#allocation2] sm:$0xff]
          %v715 = vld [vmem:[%s9] sm:$0x1]
          %v717 = vperm.slane %v715, 0
          %v719 = vadd.f32 %v714, %v717
          %720 = vst.msk [vmem:[%s483] sm:$0xff] %vm533, %v719
        $region68: #{tpu_custom_call.1} parent=59 // pred_fallthru
          _
        %s721 = sand.u32 %s310, 1
        %s722 = scalar_lea.sflag [#allocation4], %s721
        %s723 = sand.u32 %s310, 1
        %s724 = smul.addr %s723, 8
        %s725 = scalar_lea.vmem [#allocation3], %s724
        // Predicated region
        $region69: #{tpu_custom_call.1} parent=59 // pred_check
          %p726 = pneg %p320
        $region70: #{tpu_custom_call.1} parent=59 // pred_check_branch
          %728 = sbr.rel (%p726) target = $region72
        $region71: #{tpu_custom_call.1} parent=59 // pred_region
          %730 = vsyncadd %s722, 0
          %s731 = sadd.s32 %s30, %s29
          %s732 = smul.addr %s731, 8
          %s733 = scalar_lea.hbm %s10, %s732
          %s735 = sshll.u32 %s725, 4
          %s736 = int_to_ptr.vmem [resolvable:$true] %s735
          %s737 = sshll.u32 %s733, 4
          %s738 = int_to_ptr.hbm [resolvable:$true] %s737
          %740 = dma.vmem_to_hbm [thread:$0]  %s736, 128, %s738, %s722
        $region72: #{tpu_custom_call.1} parent=59 // pred_fallthru
          _
      $region60: #{tpu_custom_call.1} parent=5 // pred_fallthru
        _
      %p741 = scmp.le.s32.totalorder 2, %s19
      // Predicated region
      $region73: #{tpu_custom_call.1} parent=5 // pred_check
        %p742 = pneg %p741
      $region74: #{tpu_custom_call.1} parent=5 // pred_check_branch
        %744 = sbr.rel (%p742) target = $region76
      $region75: #{tpu_custom_call.1} parent=5 // pred_region
        %s745 = ssub.s32 %s19, 2
        // Predicated region
        $region77: #{tpu_custom_call.1} parent=75 // pred_check
          %p746 = pneg %p326
        $region78: #{tpu_custom_call.1} parent=75 // pred_check_branch
          %748 = sbr.rel (%p746) target = $region80
        $region79: #{tpu_custom_call.1} parent=75 // pred_region
          %s749 = sand.u32 %s311, 1
          %s750 = scalar_lea.sflag [#allocation4], %s749
          %s751 = sand.u32 %s311, 1
          %s752 = smul.addr %s751, 8
          %s753 = scalar_lea.vmem [#allocation3], %s752
          %755 = dma.done %s750, 128
        $region80: #{tpu_custom_call.1} parent=75 // pred_fallthru
          _
      $region76: #{tpu_custom_call.1} parent=5 // pred_fallthru
        _
    $region6: #{tpu_custom_call.1} parent=1 // loop_footer
      %s23 = sadd.s32 1, %s19
    $region7: #{tpu_custom_call.1} parent=1 // loop_footer_branch
      %18 = sbr.rel target = $region3
    $region8: #{tpu_custom_call.1} parent=1 // loop_exit
      _
    %756 = vsyncpa [#allocation4], 1
    %s757 = scalar_lea.sflag [#allocation4], 1
    %758 = vsyncpa %s757, 1

</llo_original>
